<compile_context>
chip_gen: v7x
topology: tpu7x:2x2x1
jax: 0.10.0
libtpu: 0.0.40
codegen_flags: <defaults>
</compile_context>

<pallas_src>
import functools

import jax
import jax.numpy as jnp
from jax.experimental import pallas as pl
from jax.experimental.pallas import tpu as pltpu

LANE = 128


def _round_up(x: int, m: int) -> int:
    return -(-x // m) * m


def _make_fused_mlp_kernel(n_layers: int, matmul_dtype):
    """refs = (xT, w1, b1, ..., wn, bn, outT).

    xT: [in_f, tm] (matmul_dtype), w_i: [out_i, in_i] (matmul_dtype, PyTorch-native),
    b_i: [out_i, 1] (f32), outT: [out_n, tm].
    ReLU between layers, none after the last (save_last_active=False).
    """

    def kernel(x_ref, *refs):
        o_ref = refs[-1]
        h = x_ref[...]                                   # [in_f, tm]
        for i in range(n_layers):
            w = refs[2 * i][...]                         # [fo, fi]
            b = refs[2 * i + 1][...]                     # [fo, 1] f32
            acc = jnp.dot(w, h, preferred_element_type=jnp.float32)   # [fo, tm]
            acc = acc + b                                # bias in f32
            if i < n_layers - 1:
                acc = jnp.maximum(acc, 0.0)              # nn.ReLU(), f32
                h = acc.astype(matmul_dtype)             # bf16 for next MXU pass
            else:
                h = acc
        o_ref[...] = h.astype(o_ref.dtype)

    return kernel


def multi_linear_forward(x, params, *, block_batch: int = 16384,
                         matmul_dtype=jnp.bfloat16):
    """Fused MultiLinear forward.

    x: [batch, in_features]; params: list of (w [out, in], b [out]) (PyTorch layout).
    Returns [batch, out_features_last] in x.dtype.
    """
    n = len(params)
    batch, in_f = x.shape
    out_f = params[-1][0].shape[0]
    out_dtype = x.dtype

    # Lane-dense layout: put batch on the 128-lane axis (wrapper-side plumbing).
    xT = jnp.transpose(x.astype(matmul_dtype))           # [in_f, batch]
    batch_p = _round_up(batch, LANE)
    if batch_p != batch:
        xT = jnp.pad(xT, ((0, 0), (0, batch_p - batch)))

    # Tile only the (lane) batch axis; weights/biases stay VMEM-resident.
    block_batch = max(LANE, (block_batch // LANE) * LANE)
    tm = min(block_batch, batch_p)
    if batch_p >= 2 * LANE:
        # >= 2 roughly-even grid steps so v7x's two TensorCores both get work.
        tm = min(tm, _round_up(pl.cdiv(batch_p, 2), LANE))
    grid = (pl.cdiv(batch_p, tm),)

    flat = []
    in_specs = [pl.BlockSpec((in_f, tm), lambda i: (0, i))]
    for w, b in params:
        fo, fi = w.shape
        flat.append(w.astype(matmul_dtype))
        flat.append(b.astype(jnp.float32).reshape(fo, 1))
        in_specs.append(pl.BlockSpec((fo, fi), lambda i: (0, 0)))   # resident
        in_specs.append(pl.BlockSpec((fo, 1), lambda i: (0, 0)))    # resident

    # VMEM budget: double-buffered x/out tiles + resident params + spilled
    # f32/bf16 intermediates + headroom (raises v5e's 16 MiB scoped default).
    itemsize = jnp.dtype(matmul_dtype).itemsize
    tile_bytes = 2 * (tm * in_f * itemsize
                      + tm * out_f * jnp.dtype(out_dtype).itemsize)
    param_bytes = sum(w.size * itemsize + b.size * 4 for w, b in params)
    inter_bytes = sum(w.shape[0] * tm * (4 + itemsize) for w, _ in params)
    vmem_limit = int(min(tile_bytes + param_bytes + inter_bytes + (8 << 20),
                         60 << 20))

    outT = pl.pallas_call(
        _make_fused_mlp_kernel(n, matmul_dtype),
        out_shape=jax.ShapeDtypeStruct((out_f, batch_p), out_dtype),
        grid=grid,
        in_specs=in_specs,
        out_specs=pl.BlockSpec((out_f, tm), lambda i: (0, i)),
        compiler_params=pltpu.CompilerParams(
            dimension_semantics=("parallel",),
            vmem_limit_bytes=vmem_limit),
    )(xT, *flat)

    return jnp.transpose(outT[:, :batch])


def init_params(key, num_input, num_outputs, dtype=jnp.float32):
    """PyTorch-nn.Linear-like init; weights stored PyTorch-native [out, in]."""
    params = []
    fan_in = num_input
    for num_output in num_outputs:
        key, kw, kb = jax.random.split(key, 3)
        bound = 1.0 / (fan_in ** 0.5)
        w = jax.random.uniform(kw, (num_output, fan_in), dtype,
                               minval=-bound, maxval=bound)
        b = jax.random.uniform(kb, (num_output,), dtype,
                               minval=-bound, maxval=bound)
        params.append((w, b))
        fan_in = num_output
    return params


def _reference(x, params, matmul_dtype):
    h = x
    for i, (w, b) in enumerate(params):
        h = jnp.dot(h.astype(matmul_dtype), w.astype(matmul_dtype).T,
                    preferred_element_type=jnp.float32) + b
        if i < len(params) - 1:
            h = jnp.maximum(h, 0.0)
    return h


if __name__ == "__main__":
    key = jax.random.PRNGKey(0)
    key, kx, kx2 = jax.random.split(key, 3)

    batch = 8
    num_input = 32
    num_outputs = [32, 32, 16]

    x = jax.random.normal(kx, (batch, num_input), dtype=jnp.float32)
    params = init_params(key, num_input, num_outputs)

    # 1) Exact f32 path at tiny shapes (matches the f32 reference to 1e-5).
    fwd_f32 = jax.jit(functools.partial(multi_linear_forward,
                                        matmul_dtype=jnp.float32))
    out = jax.block_until_ready(fwd_f32(x, params))
    ref = _reference(x, params, jnp.float32)
    assert out.shape == (batch, num_outputs[-1])
    assert jnp.allclose(out, ref, atol=1e-5, rtol=1e-5)

    # 2) Default perf config (bf16 matmuls, lane-dense layout), multi-step grid
    #    with a non-multiple-of-128 batch to exercise padding + slicing.
    big_batch = 300
    xb = jax.random.normal(kx2, (big_batch, num_input), dtype=jnp.float32)
    fwd_bf16 = jax.jit(functools.partial(multi_linear_forward,
                                         block_batch=128))
    out_b = jax.block_until_ready(fwd_bf16(xb, params))
    ref_b = _reference(xb, params, jnp.bfloat16)
    assert out_b.shape == (big_batch, num_outputs[-1])
    assert jnp.allclose(out_b, ref_b, atol=5e-2, rtol=5e-2)

    print("KERNEL_OK")
</pallas_src>

<mosaic_0001>
module attributes {stable_mosaic.version = 11 : i64} {
  func.func @kernel(%arg0: i32, %arg1: memref<32x128xf32, #tpu.memory_space<vmem>>, %arg2: memref<32x32xf32, #tpu.memory_space<vmem>>, %arg3: memref<32x1xf32, #tpu.memory_space<vmem>>, %arg4: memref<32x32xf32, #tpu.memory_space<vmem>>, %arg5: memref<32x1xf32, #tpu.memory_space<vmem>>, %arg6: memref<16x32xf32, #tpu.memory_space<vmem>>, %arg7: memref<16x1xf32, #tpu.memory_space<vmem>>, %arg8: memref<16x128xf32, #tpu.memory_space<vmem>>) attributes {dimension_semantics = [#tpu.dimension_semantics<parallel>], iteration_bounds = array<i64: 1>, scalar_prefetch = 0 : i64, scratch_operands = 0 : i64, tpu.core_type = #tpu.core_type<tc>, window_params = [{transform_indices = @transform_0, window_bounds = array<i64: 32, 128>}, {pipeline_mode = #tpu.pipeline_mode<synchronous>, transform_indices = @transform_1, window_bounds = array<i64: 32, 32>}, {pipeline_mode = #tpu.pipeline_mode<synchronous>, transform_indices = @transform_2, window_bounds = array<i64: 32, 1>}, {pipeline_mode = #tpu.pipeline_mode<synchronous>, transform_indices = @transform_3, window_bounds = array<i64: 32, 32>}, {pipeline_mode = #tpu.pipeline_mode<synchronous>, transform_indices = @transform_4, window_bounds = array<i64: 32, 1>}, {pipeline_mode = #tpu.pipeline_mode<synchronous>, transform_indices = @transform_5, window_bounds = array<i64: 16, 32>}, {pipeline_mode = #tpu.pipeline_mode<synchronous>, transform_indices = @transform_6, window_bounds = array<i64: 16, 1>}, {transform_indices = @transform_7, window_bounds = array<i64: 16, 128>}]} {
    %c0 = arith.constant 0 : index
    %c0_0 = arith.constant 0 : index
    %0 = vector.load %arg1[%c0, %c0_0] : memref<32x128xf32, #tpu.memory_space<vmem>>, vector<32x128xf32>
    %c0_1 = arith.constant 0 : index
    %c0_2 = arith.constant 0 : index
    %1 = vector.load %arg2[%c0_1, %c0_2] : memref<32x32xf32, #tpu.memory_space<vmem>>, vector<32x32xf32>
    %c0_3 = arith.constant 0 : index
    %c0_4 = arith.constant 0 : index
    %2 = vector.load %arg3[%c0_3, %c0_4] : memref<32x1xf32, #tpu.memory_space<vmem>>, vector<32x1xf32>
    %cst = arith.constant dense<0.000000e+00> : vector<32x128xf32>
    %3 = tpu.matmul %1, %0, %cst {dimension_numbers = #tpu.dot_dimension_numbers<[1], [0], [0], [1], [0, 0, 1, 1], [], []>} : vector<32x32xf32>, vector<32x128xf32>, vector<32x128xf32> -> vector<32x128xf32>
    %4 = vector.broadcast %2 : vector<32x1xf32> to vector<32x128xf32>
    %5 = arith.addf %3, %4 : vector<32x128xf32>
    %cst_5 = arith.constant 0.000000e+00 : f32
    %6 = vector.broadcast %cst_5 : f32 to vector<32x128xf32>
    %7 = arith.maximumf %5, %6 : vector<32x128xf32>
    %c0_6 = arith.constant 0 : index
    %c0_7 = arith.constant 0 : index
    %8 = vector.load %arg4[%c0_6, %c0_7] : memref<32x32xf32, #tpu.memory_space<vmem>>, vector<32x32xf32>
    %c0_8 = arith.constant 0 : index
    %c0_9 = arith.constant 0 : index
    %9 = vector.load %arg5[%c0_8, %c0_9] : memref<32x1xf32, #tpu.memory_space<vmem>>, vector<32x1xf32>
    %cst_10 = arith.constant dense<0.000000e+00> : vector<32x128xf32>
    %10 = tpu.matmul %8, %7, %cst_10 {dimension_numbers = #tpu.dot_dimension_numbers<[1], [0], [0], [1], [0, 0, 1, 1], [], []>} : vector<32x32xf32>, vector<32x128xf32>, vector<32x128xf32> -> vector<32x128xf32>
    %11 = vector.broadcast %9 : vector<32x1xf32> to vector<32x128xf32>
    %12 = arith.addf %10, %11 : vector<32x128xf32>
    %cst_11 = arith.constant 0.000000e+00 : f32
    %13 = vector.broadcast %cst_11 : f32 to vector<32x128xf32>
    %14 = arith.maximumf %12, %13 : vector<32x128xf32>
    %c0_12 = arith.constant 0 : index
    %c0_13 = arith.constant 0 : index
    %15 = vector.load %arg6[%c0_12, %c0_13] : memref<16x32xf32, #tpu.memory_space<vmem>>, vector<16x32xf32>
    %c0_14 = arith.constant 0 : index
    %c0_15 = arith.constant 0 : index
    %16 = vector.load %arg7[%c0_14, %c0_15] : memref<16x1xf32, #tpu.memory_space<vmem>>, vector<16x1xf32>
    %cst_16 = arith.constant dense<0.000000e+00> : vector<16x128xf32>
    %17 = tpu.matmul %15, %14, %cst_16 {dimension_numbers = #tpu.dot_dimension_numbers<[1], [0], [0], [1], [0, 0, 1, 1], [], []>} : vector<16x32xf32>, vector<32x128xf32>, vector<16x128xf32> -> vector<16x128xf32>
    %18 = vector.broadcast %16 : vector<16x1xf32> to vector<16x128xf32>
    %19 = arith.addf %17, %18 : vector<16x128xf32>
    %c0_17 = arith.constant 0 : index
    %c0_18 = arith.constant 0 : index
    %20 = vector.load %arg8[%c0_17, %c0_18] : memref<16x128xf32, #tpu.memory_space<vmem>>, vector<16x128xf32>
    tpu.vector_store %arg8[%c0_17, %c0_18], %19 {strides = array<i32>} : memref<16x128xf32, #tpu.memory_space<vmem>>, vector<16x128xf32>,
    return
  }
  func.func @transform_0(%arg0: i32) -> (i32, i32) {
    %c0_i32 = arith.constant 0 : i32
    %c0_i32_0 = arith.constant 0 : i32
    return %c0_i32, %arg0 : i32, i32
  }
  func.func @transform_1(%arg0: i32) -> (i32, i32) {
    %c0_i32 = arith.constant 0 : i32
    %c0_i32_0 = arith.constant 0 : i32
    %c0_i32_1 = arith.constant 0 : i32
    return %c0_i32, %c0_i32_0 : i32, i32
  }
  func.func @transform_2(%arg0: i32) -> (i32, i32) {
    %c0_i32 = arith.constant 0 : i32
    %c0_i32_0 = arith.constant 0 : i32
    %c0_i32_1 = arith.constant 0 : i32
    return %c0_i32, %c0_i32_0 : i32, i32
  }
  func.func @transform_3(%arg0: i32) -> (i32, i32) {
    %c0_i32 = arith.constant 0 : i32
    %c0_i32_0 = arith.constant 0 : i32
    %c0_i32_1 = arith.constant 0 : i32
    return %c0_i32, %c0_i32_0 : i32, i32
  }
  func.func @transform_4(%arg0: i32) -> (i32, i32) {
    %c0_i32 = arith.constant 0 : i32
    %c0_i32_0 = arith.constant 0 : i32
    %c0_i32_1 = arith.constant 0 : i32
    return %c0_i32, %c0_i32_0 : i32, i32
  }
  func.func @transform_5(%arg0: i32) -> (i32, i32) {
    %c0_i32 = arith.constant 0 : i32
    %c0_i32_0 = arith.constant 0 : i32
    %c0_i32_1 = arith.constant 0 : i32
    return %c0_i32, %c0_i32_0 : i32, i32
  }
  func.func @transform_6(%arg0: i32) -> (i32, i32) {
    %c0_i32 = arith.constant 0 : i32
    %c0_i32_0 = arith.constant 0 : i32
    %c0_i32_1 = arith.constant 0 : i32
    return %c0_i32, %c0_i32_0 : i32, i32
  }
  func.func @transform_7(%arg0: i32) -> (i32, i32) {
    %c0_i32 = arith.constant 0 : i32
    %c0_i32_0 = arith.constant 0 : i32
    return %c0_i32, %arg0 : i32, i32
  }
}

</mosaic_0001>

<llo_original>
// kernel: multi_linear_forward.1
$region0: #{multi_linear_forward.1}
  #allocation0 [shape = 'u32[]', space=smem, size = 0x4, offset = 0x4, fixed_abs, tag = 'smem constant byte address 0x4 - core index']
  #allocation1 [shape = 'u32[144,128]{1,0:T(1,128)}', space=vmem, size = 0x12000, scoped, tag = 'internal scratch']
  %s0 = inlined_call_operand.vmem [shape: f32[32,128], index: 0, kind: input, shape index: {}]
  %s1 = inlined_call_operand.vmem [shape: f32[32,32], index: 1, kind: input, shape index: {}]
  %s2 = inlined_call_operand.vmem [shape: f32[32,1], index: 2, kind: input, shape index: {}]
  %s3 = inlined_call_operand.vmem [shape: f32[32,32], index: 3, kind: input, shape index: {}]
  %s4 = inlined_call_operand.vmem [shape: f32[32,1], index: 4, kind: input, shape index: {}]
  %s5 = inlined_call_operand.vmem [shape: f32[16,32], index: 5, kind: input, shape index: {}]
  %s6 = inlined_call_operand.vmem [shape: f32[16,1], index: 6, kind: input, shape index: {}]
  %s7 = inlined_call_operand.vmem [shape: f32[16,128], index: 7, kind: output, shape index: {}]
  %s8 = sld [smem:[#allocation0]]
  $region38: #{multi_linear_forward.1} parent=0
    _
  %s10 = ssub.s32 1, %s8
  %s11 = scalar_select 0, %s10, %s8
  // Predicated region
  $region2: #{multi_linear_forward.1} parent=0 // pred_check
    _
  $region3: #{multi_linear_forward.1} parent=0 // pred_check_branch
    %13 = sbr.rel (0) target = $region5
  $region4: #{multi_linear_forward.1} parent=0 // pred_region
    _
  $region5: #{multi_linear_forward.1} parent=0 // pred_fallthru
    _
  // Predicated region
  $region6: #{multi_linear_forward.1} parent=0 // pred_check
    _
  $region7: #{multi_linear_forward.1} parent=0 // pred_check_branch
    %15 = sbr.rel (0) target = $region9
  $region8: #{multi_linear_forward.1} parent=0 // pred_region
    _
  $region9: #{multi_linear_forward.1} parent=0 // pred_fallthru
    _
  // Predicated region
  $region10: #{multi_linear_forward.1} parent=0 // pred_check
    _
  $region11: #{multi_linear_forward.1} parent=0 // pred_check_branch
    %17 = sbr.rel (0) target = $region13
  $region12: #{multi_linear_forward.1} parent=0 // pred_region
    _
  $region13: #{multi_linear_forward.1} parent=0 // pred_fallthru
    _
  // Predicated region
  $region14: #{multi_linear_forward.1} parent=0 // pred_check
    _
  $region15: #{multi_linear_forward.1} parent=0 // pred_check_branch
    %19 = sbr.rel (0) target = $region17
  $region16: #{multi_linear_forward.1} parent=0 // pred_region
    _
  $region17: #{multi_linear_forward.1} parent=0 // pred_fallthru
    _
  // Predicated region
  $region18: #{multi_linear_forward.1} parent=0 // pred_check
    _
  $region19: #{multi_linear_forward.1} parent=0 // pred_check_branch
    %21 = sbr.rel (0) target = $region21
  $region20: #{multi_linear_forward.1} parent=0 // pred_region
    _
  $region21: #{multi_linear_forward.1} parent=0 // pred_fallthru
    _
  // Predicated region
  $region22: #{multi_linear_forward.1} parent=0 // pred_check
    _
  $region23: #{multi_linear_forward.1} parent=0 // pred_check_branch
    %23 = sbr.rel (0) target = $region25
  $region24: #{multi_linear_forward.1} parent=0 // pred_region
    _
  $region25: #{multi_linear_forward.1} parent=0 // pred_fallthru
    _
  // Predicated region
  $region26: #{multi_linear_forward.1} parent=0 // pred_check
    _
  $region27: #{multi_linear_forward.1} parent=0 // pred_check_branch
    %25 = sbr.rel (0) target = $region29
  $region28: #{multi_linear_forward.1} parent=0 // pred_region
    _
  $region29: #{multi_linear_forward.1} parent=0 // pred_fallthru
    _
  %v26 = vld [vmem:[%s0] sm:$0xff]
  %v27 = vld [vmem:[%s0 + $0x8] sm:$0xff]
  %v28 = vld [vmem:[%s0 + $0x10] sm:$0xff]
  %v29 = vld [vmem:[%s0 + $0x18] sm:$0xff]
  %v30 = vld [vmem:[%s1] sm:$0xff]
  %v31 = vld [vmem:[%s1 + $0x8] sm:$0xff]
  %v32 = vld [vmem:[%s1 + $0x10] sm:$0xff]
  %v33 = vld [vmem:[%s1 + $0x18] sm:$0xff]
  %v34 = vld [vmem:[%s2] sm:$0xff]
  %v35 = vld [vmem:[%s2 + $0x8] sm:$0xff]
  %v36 = vld [vmem:[%s2 + $0x10] sm:$0xff]
  %v37 = vld [vmem:[%s2 + $0x18] sm:$0xff]
  %39 = vset.pattern.permute.xlu0 0
  %40 = vperm.xlu0 %39, %v34
  %v41 = vpop.permute.xlu0 %40
  %44 = vset.pattern.permute.xlu0 0
  %45 = vperm.xlu0 %44, %v35
  %v46 = vpop.permute.xlu0 %45
  %49 = vset.pattern.permute.xlu0 0
  %50 = vperm.xlu0 %49, %v36
  %v51 = vpop.permute.xlu0 %50
  %54 = vset.pattern.permute.xlu0 0
  %55 = vperm.xlu0 %54, %v37
  %v56 = vpop.permute.xlu0 %55
  %vm58 = vcmask 261120
  %v60 = vsel %vm58, %v30, 0
  %v63 = vsel %vm58, %v31, 0
  %v66 = vsel %vm58, %v32, 0
  %v69 = vsel %vm58, %v33, 0
  %71 = vmatprep.subr.mxu0 0.0
  %72 = vmatpush1.msra.mxu0 %v26
  %73 = vmatprep.subr.mxu0 0.0
  %74 = vmatpush1.msra.mxu0 %v27
  %75 = vmatprep.subr.mxu0 0.0
  %76 = vmatpush1.msra.mxu0 %v28
  %77 = vmatprep.subr.mxu0 0.0
  %78 = vmatpush1.msra.mxu0 %v29
  %79 = vmatprep.subr.mxu0 0.0
  %80 = vmatpush1.msra.mxu0 0.0
  %81 = vmatprep.subr.mxu0 0.0
  %82 = vmatpush1.msra.mxu0 0.0
  %83 = vmatprep.subr.mxu0 0.0
  %84 = vmatpush1.msra.mxu0 0.0
  %85 = vmatprep.subr.mxu0 0.0
  %86 = vmatpush1.msra.mxu0 0.0
  %87 = vmatprep.subr.mxu0 0.0
  %88 = vmatpush1.msra.mxu0 0.0
  %89 = vmatprep.subr.mxu0 0.0
  %90 = vmatpush1.msra.mxu0 0.0
  %91 = vmatprep.subr.mxu0 0.0
  %92 = vmatpush1.msra.mxu0 0.0
  %93 = vmatprep.subr.mxu0 0.0
  %94 = vmatpush1.msra.mxu0 0.0
  %95 = vmatprep.subr.mxu0 0.0
  %96 = vmatpush1.msra.mxu0 0.0
  %97 = vmatprep.subr.mxu0 0.0
  %98 = vmatpush1.msra.mxu0 0.0
  %99 = vmatprep.subr.mxu0 0.0
  %100 = vmatpush1.msra.mxu0 0.0
  %101 = vmatprep.subr.mxu0 0.0
  %102 = vmatpush1.msra.mxu0 0.0
  %103 = vmatprep.subr.mxu0 0.0
  %104 = vmatpush1.msra.mxu0 0.0
  %105 = vmatprep.subr.mxu0 0.0
  %106 = vmatpush1.msra.mxu0 0.0
  %107 = vmatprep.subr.mxu0 0.0
  %108 = vmatpush1.msra.mxu0 0.0
  %109 = vmatprep.subr.mxu0 0.0
  %110 = vmatpush1.msra.mxu0 0.0
  %111 = vmatprep.subr.mxu0 0.0
  %112 = vmatpush1.msra.mxu0 0.0
  %113 = vmatprep.subr.mxu0 0.0
  %114 = vmatpush1.msra.mxu0 0.0
  %115 = vmatprep.subr.mxu0 0.0
  %116 = vmatpush1.msra.mxu0 0.0
  %117 = vmatprep.subr.mxu0 0.0
  %118 = vmatpush1.msra.mxu0 0.0
  %119 = vmatprep.subr.mxu0 0.0
  %120 = vmatpush1.msra.mxu0 0.0
  %121 = vmatprep.subr.mxu0 0.0
  %122 = vmatpush1.msra.mxu0 0.0
  %123 = vmatprep.subr.mxu0 0.0
  %124 = vmatpush1.msra.mxu0 0.0
  %125 = vmatprep.subr.mxu0 0.0
  %126 = vmatpush1.msra.mxu0 0.0
  %127 = vmatprep.subr.mxu0 0.0
  %128 = vmatpush1.msra.mxu0 0.0
  %129 = vmatprep.subr.mxu0 0.0
  %130 = vmatpush1.msra.mxu0 0.0
  %131 = vmatprep.subr.mxu0 0.0
  %132 = vmatpush1.msra.mxu0 0.0
  %133 = vmatprep.subr.mxu0 0.0
  %134 = vmatpush1.msra.mxu0 0.0
  %135 = vmatprep.mubr.f32.mxu0 0.0
  %136 = vmatmul.mubr.f32.gmra.mrb[0].mxu0 %v60
  %v137 = vpop.f32.mrb[0].mxu0
  %v138 = vadd.f32 %v41, %v137
  %v139 = vpop.f32.mrb[0].mxu0
  %140 = vmatprep.mubr.f32.mxu0 0.0
  %141 = vmatmul.mubr.f32.gmra.mrb[0].mxu0 %v63
  %v142 = vpop.f32.mrb[0].mxu0
  %v143 = vadd.f32 %v46, %v142
  %v144 = vpop.f32.mrb[0].mxu0
  %145 = vmatprep.mubr.f32.mxu0 0.0
  %146 = vmatmul.mubr.f32.gmra.mrb[0].mxu0 %v66
  %v147 = vpop.f32.mrb[0].mxu0
  %v148 = vadd.f32 %v51, %v147
  %v149 = vpop.f32.mrb[0].mxu0
  %150 = vmatprep.mubr.f32.mxu0 0.0
  %151 = vmatmul.mubr.f32.gmra.mrb[0].mxu0 %v69
  %v152 = vpop.f32.mrb[0].mxu0
  %v153 = vadd.f32 %v56, %v152
  %v154 = vpop.f32.mrb[0].mxu0
  %155 = vdwg.mxu0
  %v156 = vmax.f32 %v138, 0.0
  %v157 = vmax.f32 %v143, 0.0
  %v158 = vmax.f32 %v148, 0.0
  %v159 = vmax.f32 %v153, 0.0
  %v160 = vld [vmem:[%s3] sm:$0xff]
  %v161 = vld [vmem:[%s3 + $0x8] sm:$0xff]
  %v162 = vld [vmem:[%s3 + $0x10] sm:$0xff]
  %v163 = vld [vmem:[%s3 + $0x18] sm:$0xff]
  %v164 = vld [vmem:[%s4] sm:$0xff]
  %v165 = vld [vmem:[%s4 + $0x8] sm:$0xff]
  %v166 = vld [vmem:[%s4 + $0x10] sm:$0xff]
  %v167 = vld [vmem:[%s4 + $0x18] sm:$0xff]
  %169 = vset.pattern.permute.xlu0 0
  %170 = vperm.xlu0 %169, %v164
  %v171 = vpop.permute.xlu0 %170
  %174 = vset.pattern.permute.xlu0 0
  %175 = vperm.xlu0 %174, %v165
  %v176 = vpop.permute.xlu0 %175
  %179 = vset.pattern.permute.xlu0 0
  %180 = vperm.xlu0 %179, %v166
  %v181 = vpop.permute.xlu0 %180
  %184 = vset.pattern.permute.xlu0 0
  %185 = vperm.xlu0 %184, %v167
  %v186 = vpop.permute.xlu0 %185
  %v189 = vsel %vm58, %v160, 0
  %v192 = vsel %vm58, %v161, 0
  %v195 = vsel %vm58, %v162, 0
  %v198 = vsel %vm58, %v163, 0
  %200 = vmatprep.subr.mxu0 0.0
  %201 = vmatpush1.msra.mxu0 %v156
  %202 = vmatprep.subr.mxu0 0.0
  %203 = vmatpush1.msra.mxu0 %v157
  %204 = vmatprep.subr.mxu0 0.0
  %205 = vmatpush1.msra.mxu0 %v158
  %206 = vmatprep.subr.mxu0 0.0
  %207 = vmatpush1.msra.mxu0 %v159
  %208 = vmatprep.subr.mxu0 0.0
  %209 = vmatpush1.msra.mxu0 0.0
  %210 = vmatprep.subr.mxu0 0.0
  %211 = vmatpush1.msra.mxu0 0.0
  %212 = vmatprep.subr.mxu0 0.0
  %213 = vmatpush1.msra.mxu0 0.0
  %214 = vmatprep.subr.mxu0 0.0
  %215 = vmatpush1.msra.mxu0 0.0
  %216 = vmatprep.subr.mxu0 0.0
  %217 = vmatpush1.msra.mxu0 0.0
  %218 = vmatprep.subr.mxu0 0.0
  %219 = vmatpush1.msra.mxu0 0.0
  %220 = vmatprep.subr.mxu0 0.0
  %221 = vmatpush1.msra.mxu0 0.0
  %222 = vmatprep.subr.mxu0 0.0
  %223 = vmatpush1.msra.mxu0 0.0
  %224 = vmatprep.subr.mxu0 0.0
  %225 = vmatpush1.msra.mxu0 0.0
  %226 = vmatprep.subr.mxu0 0.0
  %227 = vmatpush1.msra.mxu0 0.0
  %228 = vmatprep.subr.mxu0 0.0
  %229 = vmatpush1.msra.mxu0 0.0
  %230 = vmatprep.subr.mxu0 0.0
  %231 = vmatpush1.msra.mxu0 0.0
  %232 = vmatprep.subr.mxu0 0.0
  %233 = vmatpush1.msra.mxu0 0.0
  %234 = vmatprep.subr.mxu0 0.0
  %235 = vmatpush1.msra.mxu0 0.0
  %236 = vmatprep.subr.mxu0 0.0
  %237 = vmatpush1.msra.mxu0 0.0
  %238 = vmatprep.subr.mxu0 0.0
  %239 = vmatpush1.msra.mxu0 0.0
  %240 = vmatprep.subr.mxu0 0.0
  %241 = vmatpush1.msra.mxu0 0.0
  %242 = vmatprep.subr.mxu0 0.0
  %243 = vmatpush1.msra.mxu0 0.0
  %244 = vmatprep.subr.mxu0 0.0
  %245 = vmatpush1.msra.mxu0 0.0
  %246 = vmatprep.subr.mxu0 0.0
  %247 = vmatpush1.msra.mxu0 0.0
  %248 = vmatprep.subr.mxu0 0.0
  %249 = vmatpush1.msra.mxu0 0.0
  %250 = vmatprep.subr.mxu0 0.0
  %251 = vmatpush1.msra.mxu0 0.0
  %252 = vmatprep.subr.mxu0 0.0
  %253 = vmatpush1.msra.mxu0 0.0
  %254 = vmatprep.subr.mxu0 0.0
  %255 = vmatpush1.msra.mxu0 0.0
  %256 = vmatprep.subr.mxu0 0.0
  %257 = vmatpush1.msra.mxu0 0.0
  %258 = vmatprep.subr.mxu0 0.0
  %259 = vmatpush1.msra.mxu0 0.0
  %260 = vmatprep.subr.mxu0 0.0
  %261 = vmatpush1.msra.mxu0 0.0
  %262 = vmatprep.subr.mxu0 0.0
  %263 = vmatpush1.msra.mxu0 0.0
  %264 = vmatprep.mubr.f32.mxu0 0.0
  %265 = vmatmul.mubr.f32.gmra.mrb[0].mxu0 %v189
  %v266 = vpop.f32.mrb[0].mxu0
  %v267 = vadd.f32 %v171, %v266
  %v268 = vpop.f32.mrb[0].mxu0
  %269 = vmatprep.mubr.f32.mxu0 0.0
  %270 = vmatmul.mubr.f32.gmra.mrb[0].mxu0 %v192
  %v271 = vpop.f32.mrb[0].mxu0
  %v272 = vadd.f32 %v176, %v271
  %v273 = vpop.f32.mrb[0].mxu0
  %274 = vmatprep.mubr.f32.mxu0 0.0
  %275 = vmatmul.mubr.f32.gmra.mrb[0].mxu0 %v195
  %v276 = vpop.f32.mrb[0].mxu0
  %v277 = vadd.f32 %v181, %v276
  %v278 = vpop.f32.mrb[0].mxu0
  %279 = vmatprep.mubr.f32.mxu0 0.0
  %280 = vmatmul.mubr.f32.gmra.mrb[0].mxu0 %v198
  %v281 = vpop.f32.mrb[0].mxu0
  %v282 = vadd.f32 %v186, %v281
  %v283 = vpop.f32.mrb[0].mxu0
  %284 = vdwg.mxu0
  %v285 = vmax.f32 %v267, 0.0
  %v286 = vmax.f32 %v272, 0.0
  %v287 = vmax.f32 %v277, 0.0
  %v288 = vmax.f32 %v282, 0.0
  %v289 = vld [vmem:[%s5] sm:$0xff]
  %v290 = vld [vmem:[%s5 + $0x8] sm:$0xff]
  %v291 = vld [vmem:[%s6] sm:$0xff]
  %v292 = vld [vmem:[%s6 + $0x8] sm:$0xff]
  %294 = vset.pattern.permute.xlu0 0
  %295 = vperm.xlu0 %294, %v291
  %v296 = vpop.permute.xlu0 %295
  %299 = vset.pattern.permute.xlu0 0
  %300 = vperm.xlu0 %299, %v292
  %v301 = vpop.permute.xlu0 %300
  %v304 = vsel %vm58, %v289, 0
  %v307 = vsel %vm58, %v290, 0
  %309 = vmatprep.subr.mxu0 0.0
  %310 = vmatpush1.msra.mxu0 %v285
  %311 = vmatprep.subr.mxu0 0.0
  %312 = vmatpush1.msra.mxu0 %v286
  %313 = vmatprep.subr.mxu0 0.0
  %314 = vmatpush1.msra.mxu0 %v287
  %315 = vmatprep.subr.mxu0 0.0
  %316 = vmatpush1.msra.mxu0 %v288
  %317 = vmatprep.subr.mxu0 0.0
  %318 = vmatpush1.msra.mxu0 0.0
  %319 = vmatprep.subr.mxu0 0.0
  %320 = vmatpush1.msra.mxu0 0.0
  %321 = vmatprep.subr.mxu0 0.0
  %322 = vmatpush1.msra.mxu0 0.0
  %323 = vmatprep.subr.mxu0 0.0
  %324 = vmatpush1.msra.mxu0 0.0
  %325 = vmatprep.subr.mxu0 0.0
  %326 = vmatpush1.msra.mxu0 0.0
  %327 = vmatprep.subr.mxu0 0.0
  %328 = vmatpush1.msra.mxu0 0.0
  %329 = vmatprep.subr.mxu0 0.0
  %330 = vmatpush1.msra.mxu0 0.0
  %331 = vmatprep.subr.mxu0 0.0
  %332 = vmatpush1.msra.mxu0 0.0
  %333 = vmatprep.subr.mxu0 0.0
  %334 = vmatpush1.msra.mxu0 0.0
  %335 = vmatprep.subr.mxu0 0.0
  %336 = vmatpush1.msra.mxu0 0.0
  %337 = vmatprep.subr.mxu0 0.0
  %338 = vmatpush1.msra.mxu0 0.0
  %339 = vmatprep.subr.mxu0 0.0
  %340 = vmatpush1.msra.mxu0 0.0
  %341 = vmatprep.subr.mxu0 0.0
  %342 = vmatpush1.msra.mxu0 0.0
  %343 = vmatprep.subr.mxu0 0.0
  %344 = vmatpush1.msra.mxu0 0.0
  %345 = vmatprep.subr.mxu0 0.0
  %346 = vmatpush1.msra.mxu0 0.0
  %347 = vmatprep.subr.mxu0 0.0
  %348 = vmatpush1.msra.mxu0 0.0
  %349 = vmatprep.subr.mxu0 0.0
  %350 = vmatpush1.msra.mxu0 0.0
  %351 = vmatprep.subr.mxu0 0.0
  %352 = vmatpush1.msra.mxu0 0.0
  %353 = vmatprep.subr.mxu0 0.0
  %354 = vmatpush1.msra.mxu0 0.0
  %355 = vmatprep.subr.mxu0 0.0
  %356 = vmatpush1.msra.mxu0 0.0
  %357 = vmatprep.subr.mxu0 0.0
  %358 = vmatpush1.msra.mxu0 0.0
  %359 = vmatprep.subr.mxu0 0.0
  %360 = vmatpush1.msra.mxu0 0.0
  %361 = vmatprep.subr.mxu0 0.0
  %362 = vmatpush1.msra.mxu0 0.0
  %363 = vmatprep.subr.mxu0 0.0
  %364 = vmatpush1.msra.mxu0 0.0
  %365 = vmatprep.subr.mxu0 0.0
  %366 = vmatpush1.msra.mxu0 0.0
  %367 = vmatprep.subr.mxu0 0.0
  %368 = vmatpush1.msra.mxu0 0.0
  %369 = vmatprep.subr.mxu0 0.0
  %370 = vmatpush1.msra.mxu0 0.0
  %371 = vmatprep.subr.mxu0 0.0
  %372 = vmatpush1.msra.mxu0 0.0
  %373 = vmatprep.mubr.f32.mxu0 0.0
  %374 = vmatmul.mubr.f32.gmra.mrb[0].mxu0 %v304
  %v375 = vpop.f32.mrb[0].mxu0
  %v376 = vadd.f32 %v296, %v375
  %v377 = vpop.f32.mrb[0].mxu0
  %378 = vmatprep.mubr.f32.mxu0 0.0
  %379 = vmatmul.mubr.f32.gmra.mrb[0].mxu0 %v307
  %v380 = vpop.f32.mrb[0].mxu0
  %v381 = vadd.f32 %v301, %v380
  %v382 = vpop.f32.mrb[0].mxu0
  %383 = vdwg.mxu0
  %384 = vst [vmem:[%s7] sm:$0xff] %v376
  %385 = vst [vmem:[%s7 + $0x8] sm:$0xff] %v381
  // Predicated region
  $region30: #{multi_linear_forward.1} parent=0 // pred_check
    _
  $region31: #{multi_linear_forward.1} parent=0 // pred_check_branch
    %387 = sbr.rel (0) target = $region33
  $region32: #{multi_linear_forward.1} parent=0 // pred_region
    _
  $region33: #{multi_linear_forward.1} parent=0 // pred_fallthru
    _
  // Predicated region
  $region34: #{multi_linear_forward.1} parent=0 // pred_check
    _
  $region35: #{multi_linear_forward.1} parent=0 // pred_check_branch
    %389 = sbr.rel (0) target = $region37
  $region36: #{multi_linear_forward.1} parent=0 // pred_region
    _
  $region37: #{multi_linear_forward.1} parent=0 // pred_fallthru
    _

</llo_original>
